<compile_context>
chip_gen: v7x
topology: tpu7x:2x2x1
jax: 0.10.0
libtpu: 0.0.40
codegen_flags: <defaults>
</compile_context>

<pallas_src>
import jax
import jax.numpy as jnp
from jax.experimental import pallas as pl
from jax.experimental.pallas import tpu as pltpu

KH = KW = 3      # Conv2d(1, 1, 3, 1): 3x3 kernel, stride 1, no padding
LANE = 128
SUBLANE = 8


def _round_up(x, m):
    return (x + m - 1) // m * m


def conv3x3_kernel(w_ref, b_ref, body_ref, halo_ref, o_ref):
    """One (batch b, row-tile t) grid step of the 3x3 valid convolution.

    w_ref:    (3, 3)        f32 SMEM   conv taps
    b_ref:    (1,)          f32 SMEM   bias
    body_ref: (1, tOH, Wp)  f32 VMEM   input rows [t*tOH, (t+1)*tOH)
    halo_ref: (1, 8,   Wp)  f32 VMEM   input rows [(t+1)*tOH, (t+1)*tOH + 8)
    o_ref:    (1, tOH, Wp)  f32 VMEM   output rows [t*tOH, (t+1)*tOH)
    """
    toh, wp = o_ref.shape[1], o_ref.shape[2]

    # Assemble the halo'd (tOH + 2, Wp) input window for this tile. tOH is a
    # multiple of 8, so the seam is sublane-tile aligned (cheap concat).
    xwin = jnp.concatenate([body_ref[0], halo_ref[0, :KH - 1, :]], axis=0)

    acc = jnp.full((toh, wp), b_ref[0], dtype=jnp.float32)
    # 3 row-shifted views; column shifts as static lane rotations. Wrapped
    # lanes only pollute columns >= OW, which the wrapper slices off.
    for kh in range(KH):
        row = xwin[kh:kh + toh, :]
        acc = acc + row * w_ref[kh, 0]
        acc = acc + jnp.roll(row, -1, axis=-1) * w_ref[kh, 1]
        acc = acc + jnp.roll(row, -2, axis=-1) * w_ref[kh, 2]
    o_ref[0, :, :] = acc


def net_forward(x_nchw, weight, bias, *, max_tile_rows=512,
                vmem_limit_bytes=32 * 1024 * 1024):
    """x_nchw: (B, 1, H, W); weight: (1, 1, 3, 3); bias: (1,). Returns (B, 1, H-2, W-2)."""
    B, C, H, W = x_nchw.shape
    assert C == 1, "Net uses Conv2d(1, 1, 3, 1)"
    assert H >= KH and W >= KW
    OH, OW = H - KH + 1, W - KW + 1

    # Lane-dense padded width.
    WP = _round_up(W, LANE)

    # Row tile: multiple of 8; capped so double-buffered (body + out) blocks
    # stay around <= 8 MiB -> safe under v5e/v6e/v7x scoped VMEM limits.
    budget_rows = (8 * 1024 * 1024) // (16 * WP)
    budget_rows = max(SUBLANE, (budget_rows // SUBLANE) * SUBLANE)
    TOH = min(_round_up(OH, SUBLANE), _round_up(max_tile_rows, SUBLANE), budget_rows)
    T = pl.cdiv(OH, TOH)
    OH_PAD = T * TOH
    H_PAD = OH_PAD + SUBLANE          # room for the last tile's 8-row halo block
    halo_blk = TOH // SUBLANE         # halo block-index stride (units of 8 rows)

    x3 = x_nchw.reshape(B, H, W).astype(jnp.float32)
    x_pad = jnp.pad(x3, ((0, 0), (0, H_PAD - H), (0, WP - W)))
    w2 = weight.reshape(KH, KW).astype(jnp.float32)
    b1 = bias.reshape(1).astype(jnp.float32)

    out = pl.pallas_call(
        conv3x3_kernel,
        out_shape=jax.ShapeDtypeStruct((B, OH_PAD, WP), jnp.float32),
        grid=(B, T),
        in_specs=[
            pl.BlockSpec((KH, KW), lambda b, t: (0, 0),
                         memory_space=pltpu.MemorySpace.SMEM),
            pl.BlockSpec((1,), lambda b, t: (0,),
                         memory_space=pltpu.MemorySpace.SMEM),
            # body rows of this tile
            pl.BlockSpec((1, TOH, WP), lambda b, t: (b, t, 0)),
            # 8-row halo starting at the next tile boundary (block-aligned)
            pl.BlockSpec((1, SUBLANE, WP), lambda b, t: (b, (t + 1) * halo_blk, 0)),
        ],
        out_specs=pl.BlockSpec((1, TOH, WP), lambda b, t: (b, t, 0)),
        compiler_params=pltpu.CompilerParams(
            dimension_semantics=("parallel", "parallel"),
            vmem_limit_bytes=vmem_limit_bytes,
        ),
        cost_estimate=pl.CostEstimate(
            flops=2 * KH * KW * B * OH * OW,
            transcendentals=0,
            bytes_accessed=4 * B * (H * W + OH * OW),
        ),
    )(w2, b1, x_pad, x_pad)

    # Drop padded rows/lanes; restore NCHW.
    return out[:, :OH, :OW].reshape(B, 1, OH, OW)


if __name__ == "__main__":
    key = jax.random.PRNGKey(0)
    k_x, k_w, k_b = jax.random.split(key, 3)

    # Small shapes consistent with the module: Conv2d(1, 1, 3, 1) -> C must be 1.
    B, C, H, W = 2, 1, 16, 16
    x = jax.random.normal(k_x, (B, C, H, W), dtype=jnp.float32)

    # Deterministic PyTorch-style uniform +-1/sqrt(fan_in), fan_in = 1*3*3 = 9.
    bound = 1.0 / jnp.sqrt(9.0)
    weight = jax.random.uniform(k_w, (1, 1, KH, KW), minval=-bound, maxval=bound,
                                dtype=jnp.float32)
    bias = jax.random.uniform(k_b, (1,), minval=-bound, maxval=bound,
                              dtype=jnp.float32)

    y = net_forward(x, weight, bias)
    jax.block_until_ready(y)

    # Reference check against XLA conv (same semantics as torch Conv2d, valid padding).
    y_ref = jax.lax.conv_general_dilated(
        x, weight, window_strides=(1, 1), padding="VALID",
        dimension_numbers=("NCHW", "OIHW", "NCHW")) + bias.reshape(1, 1, 1, 1)
    assert y.shape == (B, 1, H - KH + 1, W - KW + 1)
    assert jnp.allclose(y, y_ref, atol=1e-5, rtol=1e-5)

    print("KERNEL_OK")
</pallas_src>

<mosaic_0001>
module attributes {stable_mosaic.version = 11 : i64} {
  func.func @conv3x3_kernel(%arg0: i32, %arg1: i32, %arg2: memref<3x3xf32, #tpu.memory_space<smem>>, %arg3: memref<1xf32, #tpu.memory_space<smem>>, %arg4: memref<1x16x128xf32, #tpu.memory_space<vmem>>, %arg5: memref<1x8x128xf32, #tpu.memory_space<vmem>>, %arg6: memref<1x16x128xf32, #tpu.memory_space<vmem>>) attributes {dimension_semantics = [#tpu.dimension_semantics<parallel>, #tpu.dimension_semantics<parallel>], iteration_bounds = array<i64: 2, 1>, scalar_prefetch = 0 : i64, scratch_operands = 0 : i64, tpu.core_type = #tpu.core_type<tc>, window_params = [{transform_indices = @transform_0, window_bounds = array<i64: 3, 3>}, {transform_indices = @transform_1, window_bounds = array<i64: 1>}, {transform_indices = @transform_2, window_bounds = array<i64: 1, 16, 128>}, {transform_indices = @transform_3, window_bounds = array<i64: 1, 8, 128>}, {transform_indices = @transform_4, window_bounds = array<i64: 1, 16, 128>}]} {
    %c0 = arith.constant 0 : index
    %c0_0 = arith.constant 0 : index
    %c0_1 = arith.constant 0 : index
    %0 = vector.load %arg4[%c0, %c0_0, %c0_1] : memref<1x16x128xf32, #tpu.memory_space<vmem>>, vector<1x16x128xf32>
    %1 = vector.shape_cast %0 : vector<1x16x128xf32> to vector<16x128xf32>
    %c0_2 = arith.constant 0 : index
    %c0_3 = arith.constant 0 : index
    %c0_4 = arith.constant 0 : index
    %2 = vector.load %arg5[%c0_2, %c0_3, %c0_4] : memref<1x8x128xf32, #tpu.memory_space<vmem>>, vector<1x2x128xf32>
    %3 = vector.shape_cast %2 : vector<1x2x128xf32> to vector<2x128xf32>
    %4 = tpu.concatenate %1, %3 in 0 : vector<16x128xf32>, vector<2x128xf32> -> vector<18x128xf32>
    %c0_5 = arith.constant 0 : index
    %5 = memref.load %arg3[%c0_5] : memref<1xf32, #tpu.memory_space<smem>>
    %6 = vector.broadcast %5 : f32 to vector<16x128xf32>
    %7 = vector.extract_strided_slice %4 {offsets = [0, 0], sizes = [16, 128], strides = [1, 1]} : vector<18x128xf32> to vector<16x128xf32>
    %c0_6 = arith.constant 0 : index
    %c0_7 = arith.constant 0 : index
    %8 = memref.load %arg2[%c0_6, %c0_7] : memref<3x3xf32, #tpu.memory_space<smem>>
    %9 = vector.broadcast %8 : f32 to vector<16x128xf32>
    %10 = arith.mulf %7, %9 : vector<16x128xf32>
    %11 = arith.addf %6, %10 : vector<16x128xf32>
    %12 = vector.extract_strided_slice %7 {offsets = [0, 1], sizes = [16, 127], strides = [1, 1]} : vector<16x128xf32> to vector<16x127xf32>
    %13 = vector.extract_strided_slice %7 {offsets = [0, 0], sizes = [16, 1], strides = [1, 1]} : vector<16x128xf32> to vector<16x1xf32>
    %14 = tpu.concatenate %12, %13 in 1 : vector<16x127xf32>, vector<16x1xf32> -> vector<16x128xf32>
    %c0_8 = arith.constant 0 : index
    %c1 = arith.constant 1 : index
    %15 = memref.load %arg2[%c0_8, %c1] : memref<3x3xf32, #tpu.memory_space<smem>>
    %16 = vector.broadcast %15 : f32 to vector<16x128xf32>
    %17 = arith.mulf %14, %16 : vector<16x128xf32>
    %18 = arith.addf %11, %17 : vector<16x128xf32>
    %19 = vector.extract_strided_slice %7 {offsets = [0, 2], sizes = [16, 126], strides = [1, 1]} : vector<16x128xf32> to vector<16x126xf32>
    %20 = vector.extract_strided_slice %7 {offsets = [0, 0], sizes = [16, 2], strides = [1, 1]} : vector<16x128xf32> to vector<16x2xf32>
    %21 = tpu.concatenate %19, %20 in 1 : vector<16x126xf32>, vector<16x2xf32> -> vector<16x128xf32>
    %c0_9 = arith.constant 0 : index
    %c2 = arith.constant 2 : index
    %22 = memref.load %arg2[%c0_9, %c2] : memref<3x3xf32, #tpu.memory_space<smem>>
    %23 = vector.broadcast %22 : f32 to vector<16x128xf32>
    %24 = arith.mulf %21, %23 : vector<16x128xf32>
    %25 = arith.addf %18, %24 : vector<16x128xf32>
    %26 = vector.extract_strided_slice %4 {offsets = [1, 0], sizes = [16, 128], strides = [1, 1]} : vector<18x128xf32> to vector<16x128xf32>
    %c1_10 = arith.constant 1 : index
    %c0_11 = arith.constant 0 : index
    %27 = memref.load %arg2[%c1_10, %c0_11] : memref<3x3xf32, #tpu.memory_space<smem>>
    %28 = vector.broadcast %27 : f32 to vector<16x128xf32>
    %29 = arith.mulf %26, %28 : vector<16x128xf32>
    %30 = arith.addf %25, %29 : vector<16x128xf32>
    %31 = vector.extract_strided_slice %26 {offsets = [0, 1], sizes = [16, 127], strides = [1, 1]} : vector<16x128xf32> to vector<16x127xf32>
    %32 = vector.extract_strided_slice %26 {offsets = [0, 0], sizes = [16, 1], strides = [1, 1]} : vector<16x128xf32> to vector<16x1xf32>
    %33 = tpu.concatenate %31, %32 in 1 : vector<16x127xf32>, vector<16x1xf32> -> vector<16x128xf32>
    %c1_12 = arith.constant 1 : index
    %c1_13 = arith.constant 1 : index
    %34 = memref.load %arg2[%c1_12, %c1_13] : memref<3x3xf32, #tpu.memory_space<smem>>
    %35 = vector.broadcast %34 : f32 to vector<16x128xf32>
    %36 = arith.mulf %33, %35 : vector<16x128xf32>
    %37 = arith.addf %30, %36 : vector<16x128xf32>
    %38 = vector.extract_strided_slice %26 {offsets = [0, 2], sizes = [16, 126], strides = [1, 1]} : vector<16x128xf32> to vector<16x126xf32>
    %39 = vector.extract_strided_slice %26 {offsets = [0, 0], sizes = [16, 2], strides = [1, 1]} : vector<16x128xf32> to vector<16x2xf32>
    %40 = tpu.concatenate %38, %39 in 1 : vector<16x126xf32>, vector<16x2xf32> -> vector<16x128xf32>
    %c1_14 = arith.constant 1 : index
    %c2_15 = arith.constant 2 : index
    %41 = memref.load %arg2[%c1_14, %c2_15] : memref<3x3xf32, #tpu.memory_space<smem>>
    %42 = vector.broadcast %41 : f32 to vector<16x128xf32>
    %43 = arith.mulf %40, %42 : vector<16x128xf32>
    %44 = arith.addf %37, %43 : vector<16x128xf32>
    %45 = vector.extract_strided_slice %4 {offsets = [2, 0], sizes = [16, 128], strides = [1, 1]} : vector<18x128xf32> to vector<16x128xf32>
    %c2_16 = arith.constant 2 : index
    %c0_17 = arith.constant 0 : index
    %46 = memref.load %arg2[%c2_16, %c0_17] : memref<3x3xf32, #tpu.memory_space<smem>>
    %47 = vector.broadcast %46 : f32 to vector<16x128xf32>
    %48 = arith.mulf %45, %47 : vector<16x128xf32>
    %49 = arith.addf %44, %48 : vector<16x128xf32>
    %50 = vector.extract_strided_slice %45 {offsets = [0, 1], sizes = [16, 127], strides = [1, 1]} : vector<16x128xf32> to vector<16x127xf32>
    %51 = vector.extract_strided_slice %45 {offsets = [0, 0], sizes = [16, 1], strides = [1, 1]} : vector<16x128xf32> to vector<16x1xf32>
    %52 = tpu.concatenate %50, %51 in 1 : vector<16x127xf32>, vector<16x1xf32> -> vector<16x128xf32>
    %c2_18 = arith.constant 2 : index
    %c1_19 = arith.constant 1 : index
    %53 = memref.load %arg2[%c2_18, %c1_19] : memref<3x3xf32, #tpu.memory_space<smem>>
    %54 = vector.broadcast %53 : f32 to vector<16x128xf32>
    %55 = arith.mulf %52, %54 : vector<16x128xf32>
    %56 = arith.addf %49, %55 : vector<16x128xf32>
    %57 = vector.extract_strided_slice %45 {offsets = [0, 2], sizes = [16, 126], strides = [1, 1]} : vector<16x128xf32> to vector<16x126xf32>
    %58 = vector.extract_strided_slice %45 {offsets = [0, 0], sizes = [16, 2], strides = [1, 1]} : vector<16x128xf32> to vector<16x2xf32>
    %59 = tpu.concatenate %57, %58 in 1 : vector<16x126xf32>, vector<16x2xf32> -> vector<16x128xf32>
    %c2_20 = arith.constant 2 : index
    %c2_21 = arith.constant 2 : index
    %60 = memref.load %arg2[%c2_20, %c2_21] : memref<3x3xf32, #tpu.memory_space<smem>>
    %61 = vector.broadcast %60 : f32 to vector<16x128xf32>
    %62 = arith.mulf %59, %61 : vector<16x128xf32>
    %63 = arith.addf %56, %62 : vector<16x128xf32>
    %c0_22 = arith.constant 0 : index
    %c0_23 = arith.constant 0 : index
    %c0_24 = arith.constant 0 : index
    %64 = vector.load %arg6[%c0_22, %c0_23, %c0_24] : memref<1x16x128xf32, #tpu.memory_space<vmem>>, vector<1x16x128xf32>
    %65 = vector.shape_cast %64 : vector<1x16x128xf32> to vector<16x128xf32>
    %66 = vector.shape_cast %63 : vector<16x128xf32> to vector<1x16x128xf32>
    tpu.vector_store %arg6[%c0_22, %c0_23, %c0_24], %66 {strides = array<i32>} : memref<1x16x128xf32, #tpu.memory_space<vmem>>, vector<1x16x128xf32>,
    return
  }
  func.func @transform_0(%arg0: i32, %arg1: i32) -> (i32, i32) {
    %c0_i32 = arith.constant 0 : i32
    %c0_i32_0 = arith.constant 0 : i32
    %c0_i32_1 = arith.constant 0 : i32
    return %c0_i32, %c0_i32_0 : i32, i32
  }
  func.func @transform_1(%arg0: i32, %arg1: i32) -> i32 {
    %c0_i32 = arith.constant 0 : i32
    %c0_i32_0 = arith.constant 0 : i32
    return %c0_i32 : i32
  }
  func.func @transform_2(%arg0: i32, %arg1: i32) -> (i32, i32, i32) {
    %c0_i32 = arith.constant 0 : i32
    %c0_i32_0 = arith.constant 0 : i32
    return %arg0, %arg1, %c0_i32 : i32, i32, i32
  }
  func.func @transform_3(%arg0: i32, %arg1: i32) -> (i32, i32, i32) {
    %c1_i32 = arith.constant 1 : i32
    %0 = arith.addi %arg1, %c1_i32 : i32
    %c2_i32 = arith.constant 2 : i32
    %1 = arith.muli %0, %c2_i32 : i32
    %c0_i32 = arith.constant 0 : i32
    %c0_i32_0 = arith.constant 0 : i32
    return %arg0, %1, %c0_i32 : i32, i32, i32
  }
  func.func @transform_4(%arg0: i32, %arg1: i32) -> (i32, i32, i32) {
    %c0_i32 = arith.constant 0 : i32
    %c0_i32_0 = arith.constant 0 : i32
    return %arg0, %arg1, %c0_i32 : i32, i32, i32
  }
}

</mosaic_0001>

<llo_original>
// kernel: tpu_custom_call.1
$region0: #{tpu_custom_call.1}
  #allocation0 [shape = 'u32[]', space=smem, size = 0x4, offset = 0x4, fixed_abs, tag = 'smem constant byte address 0x4 - core index']
  #allocation1 [shape = 'u32[144,128]{1,0:T(1,128)}', space=vmem, size = 0x12000, scoped, tag = 'internal scratch']
  #allocation2 [shape = 'f32[1]{0:T(128)S(6)}', space=smem, size = 0x200, scoped, tag = 'scoped memory for tpu_custom_call.1']
  %s0 = inlined_call_operand.hbm [shape: f32[3,3], index: 0, kind: input, shape index: {}]
  %s1 = inlined_call_operand.<no memory space> [shape: f32[1], index: 1, kind: input, shape index: {}]
  %s2 = inlined_call_operand.hbm [shape: f32[2,24,128], index: 2, kind: input, shape index: {}]
  %s3 = inlined_call_operand.hbm [shape: f32[2,24,128], index: 3, kind: input, shape index: {}]
  %s4 = inlined_call_operand.hbm [shape: f32[2,16,128], index: 4, kind: output, shape index: {}]
  %s5 = sld [smem:[#allocation0]]
  $region61: #{tpu_custom_call.1} parent=0
    _
  %s7 = ssub.s32 1, %s5
  %s8 = scalar_select 0, %s7, %s5
  %9 = sst [smem:[#allocation2]] %s1
  $region1: #{tpu_custom_call.1} parent=0
    #allocation3 [shape = 'u8[2048]{0}', space=smem, size = 0x800, scoped, tag = 'input window, operand 0, single buffered']
    #allocation4 [shape = 's32[2]{0}', space=sflag, size = 0x8, scoped, tag = 'scoped memory for tpu_custom_call.1']
    #allocation5 [shape = 's32[2]{0}', space=sflag, size = 0x8, scoped, tag = 'scoped memory for tpu_custom_call.1']
    #allocation6 [shape = 's32[2]{0}', space=sflag, size = 0x8, scoped, tag = 'scoped memory for tpu_custom_call.1']
    #allocation7 [shape = 'u8[16384]{0}', space=vmem, size = 0x4000, scoped, tag = 'input window, operand 2']
    #allocation8 [shape = 'u8[8192]{0}', space=vmem, size = 0x2000, scoped, tag = 'input window, operand 3']
    #allocation9 [shape = 's32[2]{0}', space=sflag, size = 0x8, scoped, tag = 'scoped memory for tpu_custom_call.1']
    #allocation10 [shape = 'u8[16384]{0}', space=vmem, size = 0x4000, scoped, tag = 'output window, operand 0']
    %10 = vsyncpa [#allocation6], 0
    %11 = vsyncpa [#allocation4], 0
    %s12 = scalar_lea.sflag [#allocation4], 1
    %13 = vsyncpa %s12, 0
    %14 = vsyncpa [#allocation9], 0
    %s15 = scalar_lea.sflag [#allocation9], 1
    %16 = vsyncpa %s15, 0
    %17 = vsyncpa [#allocation5], 0
    %s18 = scalar_lea.sflag [#allocation5], 1
    %19 = vsyncpa %s18, 0
    loop: start=0, step=1, limit=4
    $region2: #{tpu_custom_call.1} parent=1 // loop_pre_header
      _
    $region3: #{tpu_custom_call.1} parent=1 // loop_header
      %s21 = sphi 0, %s25
      %p22 = scmp.ge.s32.totalorder %s21, 4
      %s28 = sphi 0, %s40
      %s29 = sphi 0, %s36
      %s30 = sphi 0, %s28
      %s31 = sphi 0, %s29
      %s32 = sphi 0, %s30
      %s33 = sphi 0, %s31
      %s41 = sphi 0, %s41
      %s43 = sphi 0, %s41
      %s44 = sphi 0, %s43
      %s58 = sphi 0, %s44
      %s62 = sphi 0, %s62
      %s64 = sphi 0, %s62
      %s65 = sphi 0, %s64
      %s79 = sphi 0, %s65
      %s87 = sphi 0, %s89
      %s90 = sphi 0, %s87
      %s91 = sphi 0, %s90
      %s107 = sphi 0, %s91
      %s119 = sphi 0, %s121
      %s122 = sphi 0, %s119
      %s123 = sphi 0, %s122
      %s139 = sphi 0, %s123
      %s147 = sphi 0, %s149
      %s150 = sphi 0, %s147
      %s151 = sphi 0, %s150
      %s167 = sphi 0, %s151
    $region4: #{tpu_custom_call.1} parent=1 // loop_header_branch
      %24 = sbr.rel (%p22) target = $region8
    $region5: #{tpu_custom_call.1} parent=1 // loop_body
      %s26 = ssub.s32 %s21, 1
      %s27 = ssub.s32 %s21, 2
      %s34 = sadd.s32 1, %s29
      %p35 = scmp.ge.s32.totalorder %s34, 1
      %s36 = scalar_select %p35, 0, %s34
      %s37 = sadd.s32 1, %s28
      %s38 = scalar_select %p35, %s37, %s28
      %p39 = scmp.ge.s32.totalorder %s38, 2
      %s40 = scalar_select %p39, 0, %s38
      %s42 = sadd.s32 %s41, 1
      %p45 = scmp.eq.s32.totalorder %s21, 1
      %p46 = scmp.ne.s32.totalorder %s41, %s43
      %p47 = scmp.eq.s32.totalorder %s21, 0
      %p48 = por %p46, %p47
      %p49 = scmp.ne.s32.totalorder %s41, %s43
      %p50 = scmp.eq.s32.totalorder %s26, 1
      %p51 = por %p49, %p50
      %p52 = scmp.ne.s32.totalorder %s43, %s44
      %p53 = scmp.eq.s32.totalorder %s26, 0
      %p54 = por %p52, %p53
      %p55 = scmp.ne.s32.totalorder %s43, %s44
      %p56 = scmp.eq.s32.totalorder %s27, 1
      %p57 = por %p55, %p56
      %p59 = scmp.ne.s32.totalorder %s44, %s58
      %p60 = scmp.eq.s32.totalorder %s27, 0
      %p61 = por %p59, %p60
      %s63 = sadd.s32 %s62, 1
      %p66 = scmp.eq.s32.totalorder %s21, 1
      %p67 = scmp.ne.s32.totalorder %s62, %s64
      %p68 = scmp.eq.s32.totalorder %s21, 0
      %p69 = por %p67, %p68
      %p70 = scmp.ne.s32.totalorder %s62, %s64
      %p71 = scmp.eq.s32.totalorder %s26, 1
      %p72 = por %p70, %p71
      %p73 = scmp.ne.s32.totalorder %s64, %s65
      %p74 = scmp.eq.s32.totalorder %s26, 0
      %p75 = por %p73, %p74
      %p76 = scmp.ne.s32.totalorder %s64, %s65
      %p77 = scmp.eq.s32.totalorder %s27, 1
      %p78 = por %p76, %p77
      %p80 = scmp.ne.s32.totalorder %s65, %s79
      %p81 = scmp.eq.s32.totalorder %s27, 0
      %p82 = por %p80, %p81
      %s83 = ssub.s32 %s28, %s40
      %s84 = ssub.s32 %s29, %s36
      %s85 = sor.u32 %s83, %s84
      %p86 = scmp.eq.s32.totalorder %s85, 0
      %s88 = sadd.s32 %s87, 1
      %s89 = scalar_select %p86, %s87, %s88
      %p92 = pneg %p86
      %p93 = scmp.eq.s32.totalorder %s21, 1
      %p94 = por %p92, %p93
      %p95 = scmp.ne.s32.totalorder %s87, %s90
      %p96 = scmp.eq.s32.totalorder %s21, 0
      %p97 = por %p95, %p96
      %p98 = scmp.ne.s32.totalorder %s87, %s90
      %p99 = scmp.eq.s32.totalorder %s26, 1
      %p100 = por %p98, %p99
      %p101 = scmp.ne.s32.totalorder %s90, %s91
      %p102 = scmp.eq.s32.totalorder %s26, 0
      %p103 = por %p101, %p102
      %p104 = scmp.ne.s32.totalorder %s90, %s91
      %p105 = scmp.eq.s32.totalorder %s27, 1
      %p106 = por %p104, %p105
      %p108 = scmp.ne.s32.totalorder %s91, %s107
      %p109 = scmp.eq.s32.totalorder %s27, 0
      %p110 = por %p108, %p109
      %s111 = sadd.s32 %s29, 1
      %s112 = smul.u32 %s111, 2
      %s113 = sadd.s32 %s36, 1
      %s114 = smul.u32 %s113, 2
      %s115 = ssub.s32 %s28, %s40
      %s116 = ssub.s32 %s112, %s114
      %s117 = sor.u32 %s115, %s116
      %p118 = scmp.eq.s32.totalorder %s117, 0
      %s120 = sadd.s32 %s119, 1
      %s121 = scalar_select %p118, %s119, %s120
      %p124 = pneg %p118
      %p125 = scmp.eq.s32.totalorder %s21, 1
      %p126 = por %p124, %p125
      %p127 = scmp.ne.s32.totalorder %s119, %s122
      %p128 = scmp.eq.s32.totalorder %s21, 0
      %p129 = por %p127, %p128
      %p130 = scmp.ne.s32.totalorder %s119, %s122
      %p131 = scmp.eq.s32.totalorder %s26, 1
      %p132 = por %p130, %p131
      %p133 = scmp.ne.s32.totalorder %s122, %s123
      %p134 = scmp.eq.s32.totalorder %s26, 0
      %p135 = por %p133, %p134
      %p136 = scmp.ne.s32.totalorder %s122, %s123
      %p137 = scmp.eq.s32.totalorder %s27, 1
      %p138 = por %p136, %p137
      %p140 = scmp.ne.s32.totalorder %s123, %s139
      %p141 = scmp.eq.s32.totalorder %s27, 0
      %p142 = por %p140, %p141
      %s143 = ssub.s32 %s28, %s40
      %s144 = ssub.s32 %s29, %s36
      %s145 = sor.u32 %s143, %s144
      %p146 = scmp.eq.s32.totalorder %s145, 0
      %s148 = sadd.s32 %s147, 1
      %s149 = scalar_select %p146, %s147, %s148
      %p152 = pneg %p146
      %p153 = scmp.eq.s32.totalorder %s21, 1
      %p154 = por %p152, %p153
      %p155 = scmp.ne.s32.totalorder %s147, %s150
      %p156 = scmp.eq.s32.totalorder %s21, 0
      %p157 = por %p155, %p156
      %p158 = scmp.ne.s32.totalorder %s147, %s150
      %p159 = scmp.eq.s32.totalorder %s26, 1
      %p160 = por %p158, %p159
      %p161 = scmp.ne.s32.totalorder %s150, %s151
      %p162 = scmp.eq.s32.totalorder %s26, 0
      %p163 = por %p161, %p162
      %p164 = scmp.ne.s32.totalorder %s150, %s151
      %p165 = scmp.eq.s32.totalorder %s27, 1
      %p166 = por %p164, %p165
      %p168 = scmp.ne.s32.totalorder %s151, %s167
      %p169 = scmp.eq.s32.totalorder %s27, 0
      %p170 = por %p168, %p169
      %p171 = scmp.le.s32.totalorder 1, %s21
      %p172 = scmp.lt.s32.totalorder %s21, 3
      %p173 = pnand %p171, %p172
      %p174 = pneg %p173
      // Predicated region
      $region9: #{tpu_custom_call.1} parent=5 // pred_check
        _
      $region10: #{tpu_custom_call.1} parent=5 // pred_check_branch
        %176 = sbr.rel (%p173) target = $region12
      $region11: #{tpu_custom_call.1} parent=5 // pred_region
        %s177 = ssub.s32 %s21, 1
        // Predicated region
        $region13: #{tpu_custom_call.1} parent=11 // pred_check
          %p178 = pneg %p54
        $region14: #{tpu_custom_call.1} parent=11 // pred_check_branch
          %180 = sbr.rel (%p178) target = $region16
        $region15: #{tpu_custom_call.1} parent=11 // pred_region
          %s182 = ssub.s32 64, 64
          %183 = vsyncadd [#allocation6], %s182
          %186 = dma.hbm_to_smem %s0, 64, [#allocation3], [#allocation6]
        $region16: #{tpu_custom_call.1} parent=11 // pred_fallthru
          _
        // Predicated region
        $region17: #{tpu_custom_call.1} parent=11 // pred_check
          %p187 = pneg %p75
        $region18: #{tpu_custom_call.1} parent=11 // pred_check_branch
          %189 = sbr.rel (%p187) target = $region20
        $region19: #{tpu_custom_call.1} parent=11 // pred_region
          _
        $region20: #{tpu_custom_call.1} parent=11 // pred_fallthru
          _
      $region12: #{tpu_custom_call.1} parent=5 // pred_fallthru
        _
      %p190 = scmp.lt.s32.totalorder %s21, 2
      // Predicated region
      $region21: #{tpu_custom_call.1} parent=5 // pred_check
        %p191 = pneg %p190
      $region22: #{tpu_custom_call.1} parent=5 // pred_check_branch
        %193 = sbr.rel (%p191) target = $region24
      $region23: #{tpu_custom_call.1} parent=5 // pred_region
        // Predicated region
        $region25: #{tpu_custom_call.1} parent=23 // pred_check
          %p194 = pneg %p97
        $region26: #{tpu_custom_call.1} parent=23 // pred_check_branch
          %196 = sbr.rel (%p194) target = $region28
        $region27: #{tpu_custom_call.1} parent=23 // pred_region
          %s197 = sand.u32 %s87, 1
          %s198 = scalar_lea.sflag [#allocation4], %s197
          %s199 = sand.u32 %s87, 1
          %s200 = smul.addr %s199, 16
          %s201 = scalar_lea.vmem [#allocation7], %s200
          %s202 = smul.u32 2, %s29
          %s203 = ssub.s32 3, %s202
          %p204 = scmp.lt.s32.totalorder %s203, 2
          %s205 = scalar_select %p204, %s203, 2
          %s206 = smul.u32 128, %s205
          %s208 = ssub.s32 256, %s206
          %209 = vsyncadd %s198, %s208
          %p210 = scmp.ne.s32.totalorder 0, %s206
          %s211 = smul.addr %s28, 3
          %s212 = sadd.s32 %s202, %s211
          %s213 = smul.addr %s212, 128
          %s214 = scalar_lea.hbm %s2, %s213
          %s215 = smul.u32 8, %s205
          %s216 = sshll.u32 %s201, 4
          %s217 = int_to_ptr.vmem [resolvable:$true] %s216
          %s218 = sshll.u32 %s215, 4
          %222 = dma.hbm_to_vmem [thread:$0]  (%p210), %s214, %s218, %s217, %s198, 128, 128, 8
        $region28: #{tpu_custom_call.1} parent=23 // pred_fallthru
          _
        // Predicated region
        $region29: #{tpu_custom_call.1} parent=23 // pred_check
          %p223 = pneg %p129
        $region30: #{tpu_custom_call.1} parent=23 // pred_check_branch
          %225 = sbr.rel (%p223) target = $region32
        $region31: #{tpu_custom_call.1} parent=23 // pred_region
          %s226 = sand.u32 %s119, 1
          %s227 = scalar_lea.sflag [#allocation9], %s226
          %s228 = sand.u32 %s119, 1
          %s229 = smul.addr %s228, 8
          %s230 = scalar_lea.vmem [#allocation8], %s229
          %s231 = sadd.s32 %s29, 1
          %s232 = smul.u32 %s231, 2
          %s234 = ssub.s32 128, 128
          %235 = vsyncadd %s227, %s234
          %s236 = smul.addr %s28, 3
          %s237 = sadd.s32 %s232, %s236
          %s238 = smul.addr %s237, 128
          %s239 = scalar_lea.hbm %s3, %s238
          %s241 = sshll.u32 %s230, 4
          %s242 = int_to_ptr.vmem [resolvable:$true] %s241
          %244 = dma.hbm_to_vmem [thread:$0]  %s239, 128, %s242, %s227
        $region32: #{tpu_custom_call.1} parent=23 // pred_fallthru
          _
      $region24: #{tpu_custom_call.1} parent=5 // pred_fallthru
        _
      %p245 = scmp.le.s32.totalorder 1, %s21
      %p246 = scmp.lt.s32.totalorder %s21, 3
      %p247 = pnand %p245, %p246
      %p248 = pneg %p247
      // Predicated region
      $region33: #{tpu_custom_call.1} parent=5 // pred_check
        _
      $region34: #{tpu_custom_call.1} parent=5 // pred_check_branch
        %250 = sbr.rel (%p247) target = $region36
      $region35: #{tpu_custom_call.1} parent=5 // pred_region
        %s251 = ssub.s32 %s21, 1
        // Predicated region
        $region37: #{tpu_custom_call.1} parent=35 // pred_check
          %p252 = pneg %p54
        $region38: #{tpu_custom_call.1} parent=35 // pred_check_branch
          %254 = sbr.rel (%p252) target = $region40
        $region39: #{tpu_custom_call.1} parent=35 // pred_region
          %255 = dma.done [#allocation6], 64
        $region40: #{tpu_custom_call.1} parent=35 // pred_fallthru
          _
        %s256 = sand.u32 %s90, 1
        %s257 = scalar_lea.sflag [#allocation4], %s256
        %s258 = sand.u32 %s90, 1
        %s259 = smul.addr %s258, 16
        %s260 = scalar_lea.vmem [#allocation7], %s259
        // Predicated region
        $region41: #{tpu_custom_call.1} parent=35 // pred_check
          %p261 = pneg %p103
        $region42: #{tpu_custom_call.1} parent=35 // pred_check_branch
          %263 = sbr.rel (%p261) target = $region44
        $region43: #{tpu_custom_call.1} parent=35 // pred_region
          %264 = dma.done %s257, 256
        $region44: #{tpu_custom_call.1} parent=35 // pred_fallthru
          _
        %s265 = sand.u32 %s122, 1
        %s266 = scalar_lea.sflag [#allocation9], %s265
        %s267 = sand.u32 %s122, 1
        %s268 = smul.addr %s267, 8
        %s269 = scalar_lea.vmem [#allocation8], %s268
        // Predicated region
        $region45: #{tpu_custom_call.1} parent=35 // pred_check
          %p270 = pneg %p135
        $region46: #{tpu_custom_call.1} parent=35 // pred_check_branch
          %272 = sbr.rel (%p270) target = $region48
        $region47: #{tpu_custom_call.1} parent=35 // pred_region
          %273 = dma.done %s266, 128
        $region48: #{tpu_custom_call.1} parent=35 // pred_fallthru
          _
        %274 = sfence
        %p275 = pneg %p54
        %p276 = pneg %p51
        %p277 = pneg %p75
        %p278 = pneg %p72
        %s279 = sand.u32 %s90, 1
        %s280 = scalar_lea.sflag [#allocation4], %s279
        %s281 = sand.u32 %s90, 1
        %s282 = smul.addr %s281, 16
        %s283 = scalar_lea.vmem [#allocation7], %s282
        %p284 = pneg %p103
        %p285 = pneg %p100
        %s286 = sand.u32 %s122, 1
        %s287 = scalar_lea.sflag [#allocation9], %s286
        %s288 = sand.u32 %s122, 1
        %s289 = smul.addr %s288, 8
        %s290 = scalar_lea.vmem [#allocation8], %s289
        %p291 = pneg %p135
        %p292 = pneg %p132
        %p293 = pneg %p163
        %p294 = pneg %p160
        %s295 = sand.u32 %s150, 1
        %s296 = scalar_lea.sflag [#allocation5], %s295
        %s297 = sand.u32 %s150, 1
        %s298 = smul.addr %s297, 16
        %s299 = scalar_lea.vmem [#allocation10], %s298
        %s300 = smul.u32 2, %s31
        %s301 = ssub.s32 3, %s300
        %p302 = scmp.lt.s32.totalorder %s301, 2
        %s303 = scalar_select %p302, %s301, 2
        %s304 = smul.u32 128, %s303
        %s305 = sadd.s32 %s31, 1
        %s306 = smul.u32 %s305, 2
        %s307 = smul.u32 2, %s31
        %v308 = vld [vmem:[%s260] sm:$0xff]
        %v309 = vld [vmem:[%s260 + $0x8] sm:$0xff]
        %v310 = vld [vmem:[%s269] sm:$0x3]
        %s311 = sld [smem:[#allocation2]]
        %v312 = vstv %s311
        %s313 = sld [smem:[#allocation3]]
        %v314 = vstv %s313
        %v315 = vmul.f32 %v308, %v314
        %v316 = vmul.f32 %v309, %v314
        %v317 = vadd.f32 %v312, %v315
        %v318 = vadd.f32 %v312, %v316
        %321 = vrot.lane.b32.xlu0 %v308, 127
        %v322 = vpop.permute.xlu0 %321
        %323 = vrot.lane.b32.xlu0 %v309, 127
        %v324 = vpop.permute.xlu0 %323
        %s327 = sld [smem:[#allocation3 + $0x1]]
        %v328 = vstv %s327
        %v329 = vmul.f32 %v322, %v328
        %v330 = vmul.f32 %v324, %v328
        %v331 = vadd.f32 %v317, %v329
        %v332 = vadd.f32 %v318, %v330
        %333 = vrot.lane.b32.xlu0 %v308, 126
        %v334 = vpop.permute.xlu0 %333
        %335 = vrot.lane.b32.xlu0 %v309, 126
        %v336 = vpop.permute.xlu0 %335
        %s339 = sld [smem:[#allocation3 + $0x2]]
        %v340 = vstv %s339
        %v341 = vmul.f32 %v334, %v340
        %v342 = vmul.f32 %v336, %v340
        %v343 = vadd.f32 %v331, %v341
        %v344 = vadd.f32 %v332, %v342
        %s345 = sld [smem:[#allocation3 + $0x80]]
        %v346 = vstv %s345
        %v347 = vmul.f32 %v308, %v346
        %v348 = vmul.f32 %v309, %v346
        %v349 = vmul.f32 %v310, %v346
        %vm353 = vcmask 1046528
        %v354 = vrot.slane %v347, 1
        %v355 = vrot.slane %v348, 1
        %v356 = vsel %vm353, %v354, %v355
        %v357 = vrot.slane %v349, 1
        %v358 = vsel %vm353, %v355, %v357
        %v361 = vadd.f32 %v343, %v356
        %v362 = vadd.f32 %v344, %v358
        %364 = vrot.lane.b32.xlu0 %v310, 127
        %v365 = vpop.permute.xlu0 %364
        %s367 = sld [smem:[#allocation3 + $0x81]]
        %v368 = vstv %s367
        %v369 = vmul.f32 %v322, %v368
        %v370 = vmul.f32 %v324, %v368
        %v371 = vmul.f32 %v365, %v368
        %v375 = vrot.slane %v369, 1
        %v376 = vrot.slane %v370, 1
        %v377 = vsel %vm353, %v375, %v376
        %v378 = vrot.slane %v371, 1
        %v379 = vsel %vm353, %v376, %v378
        %v382 = vadd.f32 %v361, %v377
        %v383 = vadd.f32 %v362, %v379
        %384 = vrot.lane.b32.xlu0 %v310, 126
        %v385 = vpop.permute.xlu0 %384
        %s387 = sld [smem:[#allocation3 + $0x82]]
        %v388 = vstv %s387
        %v389 = vmul.f32 %v334, %v388
        %v390 = vmul.f32 %v336, %v388
        %v391 = vmul.f32 %v385, %v388
        %v395 = vrot.slane %v389, 1
        %v396 = vrot.slane %v390, 1
        %v397 = vsel %vm353, %v395, %v396
        %v398 = vrot.slane %v391, 1
        %v399 = vsel %vm353, %v396, %v398
        %v402 = vadd.f32 %v382, %v397
        %v403 = vadd.f32 %v383, %v399
        %s404 = sld [smem:[#allocation3 + $0x100]]
        %v405 = vstv %s404
        %v406 = vmul.f32 %v308, %v405
        %v407 = vmul.f32 %v309, %v405
        %v408 = vmul.f32 %v310, %v405
        %vm412 = vcmask 1045504
        %v413 = vrot.slane %v406, 2
        %v414 = vrot.slane %v407, 2
        %v415 = vsel %vm412, %v413, %v414
        %v416 = vrot.slane %v408, 2
        %v417 = vsel %vm412, %v414, %v416
        %v420 = vadd.f32 %v402, %v415
        %v421 = vadd.f32 %v403, %v417
        %s422 = sld [smem:[#allocation3 + $0x101]]
        %v423 = vstv %s422
        %v424 = vmul.f32 %v322, %v423
        %v425 = vmul.f32 %v324, %v423
        %v426 = vmul.f32 %v365, %v423
        %v430 = vrot.slane %v424, 2
        %v431 = vrot.slane %v425, 2
        %v432 = vsel %vm412, %v430, %v431
        %v433 = vrot.slane %v426, 2
        %v434 = vsel %vm412, %v431, %v433
        %v437 = vadd.f32 %v420, %v432
        %v438 = vadd.f32 %v421, %v434
        %s439 = sld [smem:[#allocation3 + $0x102]]
        %v440 = vstv %s439
        %v441 = vmul.f32 %v334, %v440
        %v442 = vmul.f32 %v336, %v440
        %v443 = vmul.f32 %v385, %v440
        %v447 = vrot.slane %v441, 2
        %v448 = vrot.slane %v442, 2
        %v449 = vsel %vm412, %v447, %v448
        %v450 = vrot.slane %v443, 2
        %v451 = vsel %vm412, %v448, %v450
        %v454 = vadd.f32 %v437, %v449
        %v455 = vadd.f32 %v438, %v451
        %456 = vst [vmem:[%s299] sm:$0xff] %v454
        %457 = vst [vmem:[%s299 + $0x8] sm:$0xff] %v455
        %s458 = sand.u32 %s150, 1
        %s459 = scalar_lea.sflag [#allocation5], %s458
        %s460 = sand.u32 %s150, 1
        %s461 = smul.addr %s460, 16
        %s462 = scalar_lea.vmem [#allocation10], %s461
        // Predicated region
        $region49: #{tpu_custom_call.1} parent=35 // pred_check
          %p463 = pneg %p160
        $region50: #{tpu_custom_call.1} parent=35 // pred_check_branch
          %465 = sbr.rel (%p463) target = $region52
        $region51: #{tpu_custom_call.1} parent=35 // pred_region
          %s466 = smul.u32 2, %s31
          %s468 = ssub.s32 256, 256
          %469 = vsyncadd %s459, %s468
          %s470 = smul.addr %s30, 2
          %s471 = sadd.s32 %s466, %s470
          %s472 = smul.addr %s471, 128
          %s473 = scalar_lea.hbm %s4, %s472
          %s474 = sshll.u32 %s462, 4
          %s475 = int_to_ptr.vmem [resolvable:$true] %s474
          %480 = dma.vmem_to_hbm [thread:$0]  %s475, 256, %s473, %s459, 128, 128, 8
        $region52: #{tpu_custom_call.1} parent=35 // pred_fallthru
          _
      $region36: #{tpu_custom_call.1} parent=5 // pred_fallthru
        _
      %p481 = scmp.le.s32.totalorder 2, %s21
      // Predicated region
      $region53: #{tpu_custom_call.1} parent=5 // pred_check
        %p482 = pneg %p481
      $region54: #{tpu_custom_call.1} parent=5 // pred_check_branch
        %484 = sbr.rel (%p482) target = $region56
      $region55: #{tpu_custom_call.1} parent=5 // pred_region
        %s485 = ssub.s32 %s21, 2
        // Predicated region
        $region57: #{tpu_custom_call.1} parent=55 // pred_check
          %p486 = pneg %p166
        $region58: #{tpu_custom_call.1} parent=55 // pred_check_branch
          %488 = sbr.rel (%p486) target = $region60
        $region59: #{tpu_custom_call.1} parent=55 // pred_region
          %s489 = sand.u32 %s151, 1
          %s490 = scalar_lea.sflag [#allocation5], %s489
          %s491 = sand.u32 %s151, 1
          %s492 = smul.addr %s491, 16
          %s493 = scalar_lea.vmem [#allocation10], %s492
          %494 = dma.done %s490, 256
        $region60: #{tpu_custom_call.1} parent=55 // pred_fallthru
          _
      $region56: #{tpu_custom_call.1} parent=5 // pred_fallthru
        _
    $region6: #{tpu_custom_call.1} parent=1 // loop_footer
      %s25 = sadd.s32 1, %s21
    $region7: #{tpu_custom_call.1} parent=1 // loop_footer_branch
      %20 = sbr.rel target = $region3
    $region8: #{tpu_custom_call.1} parent=1 // loop_exit
      _
    %495 = vsyncpa [#allocation4], 1
    %s496 = scalar_lea.sflag [#allocation4], 1
    %497 = vsyncpa %s496, 1
    %498 = vsyncpa [#allocation9], 1
    %s499 = scalar_lea.sflag [#allocation9], 1
    %500 = vsyncpa %s499, 1
    %501 = vsyncpa [#allocation5], 1
    %s502 = scalar_lea.sflag [#allocation5], 1
    %503 = vsyncpa %s502, 1
    %504 = vsyncpa [#allocation6], 1
    %s505 = scalar_lea.sflag [#allocation6], 1
    %506 = vsyncpa %s505, 1

</llo_original>
